<compile_context>
chip_gen: v7x
topology: tpu7x:2x2x1
jax: 0.10.0
libtpu: 0.0.40
codegen_flags: <defaults>
</compile_context>

<pallas_src>
import math
import functools

import jax
import jax.numpy as jnp
from jax import lax
from jax.experimental import pallas as pl
from jax.experimental.pallas import tpu as pltpu


def _pos_enc_kernel(seed_ref, x_ref, pe_ref, o_ref, *,
                    p, apply_dropout, tile_s, batch, d_model):
    # x_ref: (tile_s, B, D); pe_ref: (tile_s, 1, D) -> broadcasts over B in the add.
    y = x_ref[...] + pe_ref[...]

    if apply_dropout:
        shape = y.shape
        # Global flat element index (stable w.r.t. tiling / core split).
        s_loc = lax.broadcasted_iota(jnp.int32, shape, 0).astype(jnp.uint32)
        b_idx = lax.broadcasted_iota(jnp.int32, shape, 1).astype(jnp.uint32)
        d_idx = lax.broadcasted_iota(jnp.int32, shape, 2).astype(jnp.uint32)
        s_glob = s_loc + pl.program_id(0).astype(jnp.uint32) * jnp.uint32(tile_s)
        idx = (s_glob * jnp.uint32(batch) + b_idx) * jnp.uint32(d_model) + d_idx

        # Stateless hash -> uniform uint32 bits (murmur3 finalizer, seed-mixed).
        h = idx ^ seed_ref[0].astype(jnp.uint32)
        h = h * jnp.uint32(0x9E3779B1)
        h = h ^ (h >> jnp.uint32(16))
        h = h * jnp.uint32(0x85EBCA6B)
        h = h ^ (h >> jnp.uint32(13))
        h = h * jnp.uint32(0xC2B2AE35)
        h = h ^ (h >> jnp.uint32(16))

        # Drop with probability p (threshold clamped so p ~ 1.0 can't wrap to 0).
        thresh = jnp.uint32(min(int(p * (2.0 ** 32)), 0xFFFFFFFF))
        keep = h >= thresh
        scale = jnp.asarray(1.0 / (1.0 - p), dtype=y.dtype)
        y = jnp.where(keep, y * scale, jnp.zeros_like(y))

    o_ref[...] = y.astype(o_ref.dtype)


class PositionalEncoding:
    """Pallas-TPU equivalent of the PyTorch PositionalEncoding module."""

    def __init__(self, d_model, max_len=5000, p=0.1):
        assert 0.0 <= p < 1.0, "dropout p must be in [0, 1)"
        self.p = float(p)
        # Same buffer math as the torch __init__.
        position = jnp.arange(max_len, dtype=jnp.float32)[:, None]
        div_term = jnp.exp(
            jnp.arange(0, d_model, 2, dtype=jnp.float32)
            * -(math.log(10000.0) / d_model)
        )
        pe = jnp.zeros((max_len, 1, d_model), dtype=jnp.float32)
        pe = pe.at[:, 0, 0::2].set(jnp.sin(position * div_term))
        pe = pe.at[:, 0, 1::2].set(jnp.cos(position * div_term))
        self.pe = pe  # (max_len, 1, d_model) f32 master copy

    @staticmethod
    def _pick_tile_s(S, B, D, itemsize, target_bytes=2 * 1024 * 1024):
        # ~2 MiB per x block: big enough to hit the HBM roofline, small enough
        # that double-buffered x/pe/out all fit v7x's scoped VMEM.
        rows = max(1, target_bytes // max(1, B * D * itemsize))
        return int(min(S, rows))

    def __call__(self, x, *, training=False, seed=0):
        S, B, D = x.shape
        # Keep pe un-broadcast; cast to x.dtype so its DMA traffic matches x
        # (halves pe bandwidth/VMEM when x is bf16).
        pe = self.pe[:S].astype(x.dtype)  # (S, 1, D)

        itemsize = jnp.dtype(x.dtype).itemsize
        tile_s = self._pick_tile_s(S, B, D, itemsize)
        grid = (pl.cdiv(S, tile_s),)

        apply_dropout = bool(training) and self.p > 0.0
        kernel = functools.partial(
            _pos_enc_kernel,
            p=self.p,
            apply_dropout=apply_dropout,
            tile_s=tile_s,
            batch=B,
            d_model=D,
        )
        seed_arr = jnp.asarray([seed], dtype=jnp.int32)

        # TODO(synk): for very small d_model (< 128) the output block tail is
        # lane-sparse (masked stores); realistic transformer d_model >= 128 is
        # lane-dense with this layout.
        return pl.pallas_call(
            kernel,
            out_shape=jax.ShapeDtypeStruct((S, B, D), x.dtype),
            grid_spec=pltpu.PrefetchScalarGridSpec(
                num_scalar_prefetch=1,
                grid=grid,
                in_specs=[
                    pl.BlockSpec((tile_s, B, D), lambda i, seed: (i, 0, 0)),
                    pl.BlockSpec((tile_s, 1, D), lambda i, seed: (i, 0, 0)),
                ],
                out_specs=pl.BlockSpec((tile_s, B, D), lambda i, seed: (i, 0, 0)),
            ),
            compiler_params=pltpu.CompilerParams(
                dimension_semantics=("parallel",),  # shard rows across v7x's 2 TCs
            ),
        )(seed_arr, x, pe)


if __name__ == "__main__":
    S, B, D = 8, 2, 32  # (seq_len, batch, d_model)
    key = jax.random.PRNGKey(0)
    x = jax.random.normal(key, (S, B, D), dtype=jnp.float32)

    mod = PositionalEncoding(d_model=D, max_len=64)

    # Eval mode (dropout == identity): exact check against a pure-JAX reference.
    y_eval = jax.block_until_ready(mod(x, training=False))
    ref = x + mod.pe[:S]
    assert y_eval.shape == (S, B, D)
    assert jnp.allclose(y_eval, ref, atol=1e-6), "eval-mode mismatch"

    # Training mode: add + inverted dropout (stochastic mask, so check that
    # every non-dropped element equals the scaled reference and all finite).
    y_train = jax.block_until_ready(mod(x, training=True, seed=1234))
    assert y_train.shape == (S, B, D)
    assert bool(jnp.all(jnp.isfinite(y_train)))
    scale = 1.0 / (1.0 - mod.p)
    kept = y_train != 0
    err = jnp.where(kept, jnp.abs(y_train - ref * scale), 0.0)
    assert bool(jnp.all(err < 1e-5)), "training-mode kept values mismatch"

    print("KERNEL_OK")
</pallas_src>

<mosaic_0001>
module attributes {stable_mosaic.version = 11 : i64} {
  func.func @_pos_enc_kernel(%arg0: i32, %arg1: memref<1xi32, #tpu.memory_space<smem>>, %arg2: memref<8x2x32xf32, #tpu.memory_space<vmem>>, %arg3: memref<8x1x32xf32, #tpu.memory_space<vmem>>, %arg4: memref<8x2x32xf32, #tpu.memory_space<vmem>>) attributes {dimension_semantics = [#tpu.dimension_semantics<parallel>], iteration_bounds = array<i64: 1>, scalar_prefetch = 1 : i64, scratch_operands = 0 : i64, tpu.core_type = #tpu.core_type<tc>, window_params = [{transform_indices = @transform_0, window_bounds = array<i64: 8, 2, 32>}, {transform_indices = @transform_1, window_bounds = array<i64: 8, 1, 32>}, {transform_indices = @transform_2, window_bounds = array<i64: 8, 2, 32>}]} {
    %c0 = arith.constant 0 : index
    %c0_0 = arith.constant 0 : index
    %c0_1 = arith.constant 0 : index
    %0 = vector.load %arg2[%c0, %c0_0, %c0_1] : memref<8x2x32xf32, #tpu.memory_space<vmem>>, vector<8x2x32xf32>
    %c0_2 = arith.constant 0 : index
    %c0_3 = arith.constant 0 : index
    %c0_4 = arith.constant 0 : index
    %1 = vector.load %arg3[%c0_2, %c0_3, %c0_4] : memref<8x1x32xf32, #tpu.memory_space<vmem>>, vector<8x1x32xf32>
    %2 = vector.broadcast %1 : vector<8x1x32xf32> to vector<8x2x32xf32>
    %3 = arith.addf %0, %2 : vector<8x2x32xf32>
    %c0_5 = arith.constant 0 : index
    %c0_6 = arith.constant 0 : index
    %c0_7 = arith.constant 0 : index
    %4 = vector.load %arg4[%c0_5, %c0_6, %c0_7] : memref<8x2x32xf32, #tpu.memory_space<vmem>>, vector<8x2x32xf32>
    tpu.vector_store %arg4[%c0_5, %c0_6, %c0_7], %3 {strides = array<i32>} : memref<8x2x32xf32, #tpu.memory_space<vmem>>, vector<8x2x32xf32>,
    return
  }
  func.func @transform_0(%arg0: i32, %arg1: memref<1xi32, #tpu.memory_space<smem>>) -> (i32, i32, i32) {
    %c0_i32 = arith.constant 0 : i32
    %c0_i32_0 = arith.constant 0 : i32
    %c0_i32_1 = arith.constant 0 : i32
    return %arg0, %c0_i32, %c0_i32_0 : i32, i32, i32
  }
  func.func @transform_1(%arg0: i32, %arg1: memref<1xi32, #tpu.memory_space<smem>>) -> (i32, i32, i32) {
    %c0_i32 = arith.constant 0 : i32
    %c0_i32_0 = arith.constant 0 : i32
    %c0_i32_1 = arith.constant 0 : i32
    return %arg0, %c0_i32, %c0_i32_0 : i32, i32, i32
  }
  func.func @transform_2(%arg0: i32, %arg1: memref<1xi32, #tpu.memory_space<smem>>) -> (i32, i32, i32) {
    %c0_i32 = arith.constant 0 : i32
    %c0_i32_0 = arith.constant 0 : i32
    %c0_i32_1 = arith.constant 0 : i32
    return %arg0, %c0_i32, %c0_i32_0 : i32, i32, i32
  }
}

</mosaic_0001>

<llo_original>
// kernel: tpu_custom_call.1
$region0: #{tpu_custom_call.1}
  #allocation0 [shape = 'u32[]', space=smem, size = 0x4, offset = 0x4, fixed_abs, tag = 'smem constant byte address 0x4 - core index']
  #allocation1 [shape = 'u32[144,128]{1,0:T(1,128)}', space=vmem, size = 0x12000, scoped, tag = 'internal scratch']
  #allocation2 [shape = 's32[1]{0}', space=sflag, size = 0x4, scoped, tag = 'scoped memory for tpu_custom_call.1']
  #allocation3 [shape = 's32[1]{0:T(128)S(6)}', space=smem, size = 0x200, scoped, tag = 'prefetched SMEM operand 0']
  %s0 = inlined_call_operand.<no memory space> [shape: s32[1], index: 0, kind: input, shape index: {}]
  %s1 = inlined_call_operand.hbm [shape: f32[8,2,32], index: 1, kind: input, shape index: {}]
  %s2 = inlined_call_operand.hbm [shape: f32[8,1,32], index: 2, kind: input, shape index: {}]
  %s3 = inlined_call_operand.hbm [shape: f32[8,2,32], index: 3, kind: output, shape index: {}]
  %s4 = sld [smem:[#allocation0]]
  $region26: #{tpu_custom_call.1} parent=0
    _
  %s6 = ssub.s32 1, %s4
  %s7 = scalar_select 0, %s6, %s4
  %8 = sst [smem:[#allocation3]] %s0
  $region1: #{tpu_custom_call.1} parent=0
    #allocation4 [shape = 'u8[8192]{0}', space=vmem, size = 0x2000, scoped, tag = 'input window, operand 1, single buffered']
    #allocation5 [shape = 's32[1]{0}', space=sflag, size = 0x4, scoped, tag = 'scoped memory for tpu_custom_call.1']
    #allocation6 [shape = 's32[1]{0}', space=sflag, size = 0x4, scoped, tag = 'scoped memory for tpu_custom_call.1']
    #allocation7 [shape = 'u8[4096]{0}', space=vmem, size = 0x1000, scoped, tag = 'input window, operand 2, single buffered']
    #allocation8 [shape = 's32[1]{0}', space=sflag, size = 0x4, scoped, tag = 'scoped memory for tpu_custom_call.1']
    #allocation9 [shape = 'u8[8192]{0}', space=vmem, size = 0x2000, scoped, tag = 'output window, operand 0, single buffered']
    %9 = vsyncpa [#allocation5], 0
    %10 = vsyncpa [#allocation8], 0
    %11 = vsyncpa [#allocation6], 0
    // Predicated region
    $region2: #{tpu_custom_call.1} parent=1 // pred_check
      _
    $region3: #{tpu_custom_call.1} parent=1 // pred_check_branch
      %13 = sbr.rel (0) target = $region5
    $region4: #{tpu_custom_call.1} parent=1 // pred_region
      %s15 = ssub.s32 256, 256
      %16 = vsyncadd [#allocation5], %s15
      %s17 = sshll.u32 [#allocation4], 4
      %s18 = int_to_ptr.vmem [resolvable:$true] %s17
      %23 = dma.hbm_to_vmem [thread:$0]  %s1, 256, %s18, [#allocation5], 32, 32, 2
    $region5: #{tpu_custom_call.1} parent=1 // pred_fallthru
      _
    // Predicated region
    $region6: #{tpu_custom_call.1} parent=1 // pred_check
      _
    $region7: #{tpu_custom_call.1} parent=1 // pred_check_branch
      %25 = sbr.rel (0) target = $region9
    $region8: #{tpu_custom_call.1} parent=1 // pred_region
      %s27 = ssub.s32 128, 128
      %28 = vsyncadd [#allocation8], %s27
      %s29 = sshll.u32 [#allocation7], 4
      %s30 = int_to_ptr.vmem [resolvable:$true] %s29
      %35 = dma.hbm_to_vmem [thread:$0]  %s2, 128, %s30, [#allocation8], 16, 16, 1
    $region9: #{tpu_custom_call.1} parent=1 // pred_fallthru
      _
    // Predicated region
    $region10: #{tpu_custom_call.1} parent=1 // pred_check
      _
    $region11: #{tpu_custom_call.1} parent=1 // pred_check_branch
      %37 = sbr.rel (0) target = $region13
    $region12: #{tpu_custom_call.1} parent=1 // pred_region
      %38 = dma.done [#allocation5], 256
    $region13: #{tpu_custom_call.1} parent=1 // pred_fallthru
      _
    // Predicated region
    $region14: #{tpu_custom_call.1} parent=1 // pred_check
      _
    $region15: #{tpu_custom_call.1} parent=1 // pred_check_branch
      %40 = sbr.rel (0) target = $region17
    $region16: #{tpu_custom_call.1} parent=1 // pred_region
      %41 = dma.done [#allocation8], 128
    $region17: #{tpu_custom_call.1} parent=1 // pred_fallthru
      _
    %v42 = vld [vmem:[#allocation4] sm:$0x3]
    %v43 = vld [vmem:[#allocation4 + $0x2] sm:$0x3]
    %v44 = vld [vmem:[#allocation4 + $0x4] sm:$0x3]
    %v45 = vld [vmem:[#allocation4 + $0x6] sm:$0x3]
    %v46 = vld [vmem:[#allocation4 + $0x8] sm:$0x3]
    %v47 = vld [vmem:[#allocation4 + $0xa] sm:$0x3]
    %v48 = vld [vmem:[#allocation4 + $0xc] sm:$0x3]
    %v49 = vld [vmem:[#allocation4 + $0xe] sm:$0x3]
    %v50 = vld [vmem:[#allocation7] sm:$0x1]
    %v51 = vld [vmem:[#allocation7 + $0x1] sm:$0x1]
    %v52 = vld [vmem:[#allocation7 + $0x2] sm:$0x1]
    %v53 = vld [vmem:[#allocation7 + $0x3] sm:$0x1]
    %v54 = vld [vmem:[#allocation7 + $0x4] sm:$0x1]
    %v55 = vld [vmem:[#allocation7 + $0x5] sm:$0x1]
    %v56 = vld [vmem:[#allocation7 + $0x6] sm:$0x1]
    %v57 = vld [vmem:[#allocation7 + $0x7] sm:$0x1]
    %v66 = vlaneseq
    %v67 = vshrl.u32 %v66, 7
    %v68 = vsub.s32 0, %v67
    %v69 = vrot.slane %v50, %v68
    %v70 = vlaneseq
    %v71 = vshrl.u32 %v70, 7
    %v72 = vsub.s32 0, %v71
    %v73 = vrot.slane %v51, %v72
    %v74 = vlaneseq
    %v75 = vshrl.u32 %v74, 7
    %v76 = vsub.s32 0, %v75
    %v77 = vrot.slane %v52, %v76
    %v78 = vlaneseq
    %v79 = vshrl.u32 %v78, 7
    %v80 = vsub.s32 0, %v79
    %v81 = vrot.slane %v53, %v80
    %v82 = vlaneseq
    %v83 = vshrl.u32 %v82, 7
    %v84 = vsub.s32 0, %v83
    %v85 = vrot.slane %v54, %v84
    %v86 = vlaneseq
    %v87 = vshrl.u32 %v86, 7
    %v88 = vsub.s32 0, %v87
    %v89 = vrot.slane %v55, %v88
    %v90 = vlaneseq
    %v91 = vshrl.u32 %v90, 7
    %v92 = vsub.s32 0, %v91
    %v93 = vrot.slane %v56, %v92
    %v94 = vlaneseq
    %v95 = vshrl.u32 %v94, 7
    %v96 = vsub.s32 0, %v95
    %v97 = vrot.slane %v57, %v96
    %v106 = vadd.f32 %v42, %v69
    %v107 = vadd.f32 %v43, %v73
    %v108 = vadd.f32 %v44, %v77
    %v109 = vadd.f32 %v45, %v81
    %v110 = vadd.f32 %v46, %v85
    %v111 = vadd.f32 %v47, %v89
    %v112 = vadd.f32 %v48, %v93
    %v113 = vadd.f32 %v49, %v97
    %vm114 = vcmask 254976
    %115 = vst.msk [vmem:[#allocation9] sm:$0x3] %vm114, %v106
    %116 = vst.msk [vmem:[#allocation9 + $0x2] sm:$0x3] %vm114, %v107
    %117 = vst.msk [vmem:[#allocation9 + $0x4] sm:$0x3] %vm114, %v108
    %118 = vst.msk [vmem:[#allocation9 + $0x6] sm:$0x3] %vm114, %v109
    %119 = vst.msk [vmem:[#allocation9 + $0x8] sm:$0x3] %vm114, %v110
    %120 = vst.msk [vmem:[#allocation9 + $0xa] sm:$0x3] %vm114, %v111
    %121 = vst.msk [vmem:[#allocation9 + $0xc] sm:$0x3] %vm114, %v112
    %122 = vst.msk [vmem:[#allocation9 + $0xe] sm:$0x3] %vm114, %v113
    // Predicated region
    $region18: #{tpu_custom_call.1} parent=1 // pred_check
      _
    $region19: #{tpu_custom_call.1} parent=1 // pred_check_branch
      %124 = sbr.rel (0) target = $region21
    $region20: #{tpu_custom_call.1} parent=1 // pred_region
      %s126 = ssub.s32 256, 256
      %127 = vsyncadd [#allocation6], %s126
      %s128 = sshll.u32 [#allocation9], 4
      %s129 = int_to_ptr.vmem [resolvable:$true] %s128
      %134 = dma.vmem_to_hbm [thread:$0]  %s129, 256, %s3, [#allocation6], 32, 32, 2
    $region21: #{tpu_custom_call.1} parent=1 // pred_fallthru
      _
    // Predicated region
    $region22: #{tpu_custom_call.1} parent=1 // pred_check
      _
    $region23: #{tpu_custom_call.1} parent=1 // pred_check_branch
      %136 = sbr.rel (0) target = $region25
    $region24: #{tpu_custom_call.1} parent=1 // pred_region
      %137 = dma.done [#allocation6], 256
    $region25: #{tpu_custom_call.1} parent=1 // pred_fallthru
      _
    %138 = vsyncpa [#allocation5], 1
    %139 = vsyncpa [#allocation8], 1
    %140 = vsyncpa [#allocation6], 1

</llo_original>
